<compile_context>
chip_gen: v7x
topology: tpu7x:2x2x1
jax: 0.10.0
libtpu: 0.0.40
codegen_flags: <defaults>
</compile_context>

<pallas_src>
import functools
import math
from typing import NamedTuple

import jax
import jax.numpy as jnp
from jax import lax
from jax.experimental import pallas as pl
from jax.experimental.pallas import tpu as pltpu


def _gelu_exact(x):
    # PyTorch nn.GELU default: exact (erf-based) GELU.
    return 0.5 * x * (1.0 + lax.erf(x * (1.0 / math.sqrt(2.0))))


def _gelu_tanh(x):
    # EUP-friendly tanh approximation (opt-in only; ~1e-3 deviation from erf form).
    c = math.sqrt(2.0 / math.pi)
    return 0.5 * x * (1.0 + jnp.tanh(c * (x + 0.044715 * x * x * x)))


def _round_up(x, m):
    return ((x + m - 1) // m) * m


def _state_encoding_kernel(s_ref, p_ref, o_ref, *, k1, n1, k2, n2,
                           r_b1, r_w2, r_b2, gelu):
    # s_ref: (TB, k1) streamed batch tile (native dtype); p_ref: resident f32 param slab;
    # o_ref: (TB, n2) lane-dense output tile (caller dtype).
    x = s_ref[...].astype(jnp.float32)
    # Static slices of the resident slab (8-row-aligned offsets, zero runtime cost).
    w1 = p_ref[0:k1, 0:n1]
    b1 = p_ref[r_b1:r_b1 + 1, 0:n1]
    h = gelu(jnp.dot(x, w1, preferred_element_type=jnp.float32) + b1)
    w2 = p_ref[r_w2:r_w2 + k2, 0:n2]
    b2 = p_ref[r_b2:r_b2 + 1, 0:n2]
    y = gelu(jnp.dot(h, w2, preferred_element_type=jnp.float32) + b2)
    o_ref[...] = y.astype(o_ref.dtype)


class PackedParams(NamedTuple):
    slab: jax.Array
    fold: int
    s_dim: int
    hidden_dim: int
    emb_dim: int
    k1: int
    n1: int
    k2: int
    n2: int
    r_b1: int
    r_w2: int
    r_b2: int


def _choose_fold(s_dim, hidden_dim, emb_dim):
    # Fold F batch rows per kernel row so the output width F*E is a multiple of 128 lanes
    # -> unmasked, lane-dense vector stores and dense HBM writeback.
    f = 128 // math.gcd(emb_dim, 128)
    if f * max(s_dim, hidden_dim, emb_dim) > 2048:
        # TODO(synk): widths with tiny gcd(E,128) fall back to masked partial stores.
        f = 1
    return f


def pack_state_encoding_params(w1, b1, w2, b2):
    """Build the single resident f32 parameter slab (call once per weight set)."""
    s_dim, hidden_dim = w1.shape
    emb_dim = w2.shape[1]
    f = _choose_fold(s_dim, hidden_dim, emb_dim)
    k1, n1 = f * s_dim, f * hidden_dim
    k2, n2 = f * hidden_dim, f * emb_dim

    eye_f = jnp.eye(f, dtype=jnp.float32)
    w1f = jnp.kron(eye_f, w1.astype(jnp.float32))   # (k1, n1) block-diagonal
    w2f = jnp.kron(eye_f, w2.astype(jnp.float32))   # (k2, n2) block-diagonal
    b1f = jnp.tile(b1.astype(jnp.float32), f)       # (n1,)
    b2f = jnp.tile(b2.astype(jnp.float32), f)       # (n2,)

    cols = max(n1, n2)
    r_b1 = _round_up(k1, 8)
    r_w2 = r_b1 + 8
    r_b2 = _round_up(r_w2 + k2, 8)
    rows = r_b2 + 8
    slab = jnp.zeros((rows, cols), jnp.float32)
    slab = slab.at[0:k1, 0:n1].set(w1f)
    slab = slab.at[r_b1, 0:n1].set(b1f)
    slab = slab.at[r_w2:r_w2 + k2, 0:n2].set(w2f)
    slab = slab.at[r_b2, 0:n2].set(b2f)
    return PackedParams(slab=slab, fold=f, s_dim=s_dim, hidden_dim=hidden_dim,
                        emb_dim=emb_dim, k1=k1, n1=n1, k2=k2, n2=n2,
                        r_b1=r_b1, r_w2=r_w2, r_b2=r_b2)


def state_encoding(s, w1=None, b1=None, w2=None, b2=None, *, packed=None,
                   max_tile_rows=4096, use_tanh_gelu=False):
    """StateEncoding forward. s:(B,s_dim) w1:(s_dim,H) b1:(H,) w2:(H,E) b2:(E,) -> (B,E)."""
    if packed is None:
        packed = pack_state_encoding_params(w1, b1, w2, b2)

    B, s_dim = s.shape
    assert s_dim == packed.s_dim, "input width does not match packed params"
    F, H, E = packed.fold, packed.hidden_dim, packed.emb_dim
    k1, n1, k2, n2 = packed.k1, packed.n1, packed.k2, packed.n2
    out_dtype = s.dtype
    in_bytes = jnp.dtype(s.dtype).itemsize
    out_bytes = jnp.dtype(out_dtype).itemsize

    # ---- fold F rows per kernel row (pure row-major reshape; pad only if B % F != 0) -----
    R = -(-B // F)
    if R * F != B:
        s = jnp.pad(s, ((0, R * F - B), (0, 0)))   # < F rows of padding, rare path
    s_f = s.reshape(R, k1)

    # ---- batch tiling in folded-row space -------------------------------------------------
    # Sublane alignment: f32 -> 8 rows, bf16 -> 16, int8 -> 32.
    row_align = max(8, 32 // in_bytes, 32 // out_bytes)
    # VMEM bytes per folded row: 2x double-buffered in/out tiles + f32 intermediates (h, y).
    per_row = 2 * (k1 * in_bytes + n2 * out_bytes) + 4 * (n1 + 2 * n2)
    tb_cap = max(row_align, ((24 << 20) // per_row) // row_align * row_align)

    n_tiles = pl.cdiv(R, min(max_tile_rows, tb_cap))
    if R >= 2 * row_align:
        # Give v7x's second TensorCore at least one tile; keep the tile count even.
        n_tiles = max(n_tiles, 2)
        n_tiles = 2 * ((n_tiles + 1) // 2)
    TB = min(_round_up(pl.cdiv(R, n_tiles), row_align), tb_cap)
    grid = pl.cdiv(R, TB)   # ragged last tile: padded reads, OOB writes dropped by Pallas

    slab = packed.slab
    slab_rows, slab_cols = slab.shape
    slab_bytes = slab_rows * slab_cols * 4

    # Explicit VMEM limit (v5e default scoped limit is only 16 MiB); generous 2x margin,
    # still far below v7x's 64 MiB physical because of the 24 MiB tile budget above.
    vmem_need = TB * per_row + 2 * slab_bytes + (2 << 20)
    vmem_limit = int(min(100 << 20, max(32 << 20, 2 * vmem_need)))

    gelu = _gelu_tanh if use_tanh_gelu else _gelu_exact
    kernel = functools.partial(_state_encoding_kernel, k1=k1, n1=n1, k2=k2, n2=n2,
                               r_b1=packed.r_b1, r_w2=packed.r_w2, r_b2=packed.r_b2,
                               gelu=gelu)

    out_f = pl.pallas_call(
        kernel,
        out_shape=jax.ShapeDtypeStruct((R, n2), out_dtype),
        grid_spec=pltpu.PrefetchScalarGridSpec(
            num_scalar_prefetch=0,
            grid=(grid,),
            in_specs=[
                pl.BlockSpec((TB, k1), lambda i: (i, 0)),              # streamed batch tiles
                pl.BlockSpec((slab_rows, slab_cols), lambda i: (0, 0)),  # resident param slab
            ],
            out_specs=pl.BlockSpec((TB, n2), lambda i: (i, 0)),
        ),
        compiler_params=pltpu.CompilerParams(
            dimension_semantics=("parallel",),       # shard batch tiles across TCs (v7x)
            vmem_limit_bytes=vmem_limit,
        ),
        cost_estimate=pl.CostEstimate(
            flops=int(2 * R * F * (s_dim * H + H * E)),
            transcendentals=int(R * F * (H + E)),
            bytes_accessed=int(R * (k1 * in_bytes + n2 * out_bytes) + slab_bytes),
        ),
    )(s_f, slab)

    # Unfold: (R, F*E) row-major == (R*F, E) row-major; slice only on the rare padded path.
    out = out_f.reshape(R * F, E)
    if R * F != B:
        out = out[:B]
    return out


def _init_linear(key, fan_in, fan_out, dtype=jnp.float32):
    # Mimics PyTorch nn.Linear default init: U(-1/sqrt(fan_in), 1/sqrt(fan_in)).
    kw, kb = jax.random.split(key)
    bound = 1.0 / math.sqrt(fan_in)
    w = jax.random.uniform(kw, (fan_in, fan_out), dtype, -bound, bound)
    b = jax.random.uniform(kb, (fan_out,), dtype, -bound, bound)
    return w, b


def _reference(s, w1, b1, w2, b2):
    h = _gelu_exact(s @ w1 + b1)
    return _gelu_exact(h @ w2 + b2)


if __name__ == "__main__":
    # Small shapes consistent with the module: s_dim=16, hidden_dim=32, s_emb_dim=32.
    batch, s_dim, hidden_dim, s_emb_dim = 8, 16, 32, 32

    key = jax.random.PRNGKey(0)
    k_s, k_l1, k_l2, k_s2, k_s3 = jax.random.split(key, 5)

    s = jax.random.normal(k_s, (batch, s_dim), jnp.float32)
    w1, b1 = _init_linear(k_l1, s_dim, hidden_dim)
    w2, b2 = _init_linear(k_l2, hidden_dim, s_emb_dim)

    # Build the resident parameter slab once and reuse it (hoisted out of the hot path).
    packed = pack_state_encoding_params(w1, b1, w2, b2)

    out = jax.block_until_ready(state_encoding(s, w1, b1, w2, b2))
    ref = _reference(s, w1, b1, w2, b2)
    assert out.shape == (batch, s_emb_dim)
    assert jnp.allclose(out, ref, atol=2e-5, rtol=2e-5), "mismatch vs reference (small batch)"

    # Multi-tile streaming path (several grid steps, ragged last tile, prebuilt slab).
    batch2 = 100
    s2 = jax.random.normal(k_s2, (batch2, s_dim), jnp.float32)
    out2 = jax.block_until_ready(state_encoding(s2, packed=packed, max_tile_rows=8))
    ref2 = _reference(s2, w1, b1, w2, b2)
    assert out2.shape == (batch2, s_emb_dim)
    assert jnp.allclose(out2, ref2, atol=2e-5, rtol=2e-5), "mismatch vs reference (tiled batch)"

    # Batch not divisible by the fold factor (exercises the small pad/slice fallback).
    batch3 = 37
    s3 = jax.random.normal(k_s3, (batch3, s_dim), jnp.float32)
    out3 = jax.block_until_ready(state_encoding(s3, packed=packed))
    ref3 = _reference(s3, w1, b1, w2, b2)
    assert out3.shape == (batch3, s_emb_dim)
    assert jnp.allclose(out3, ref3, atol=2e-5, rtol=2e-5), "mismatch vs reference (ragged batch)"

    print("KERNEL_OK")
</pallas_src>

<mosaic_0001>
module attributes {stable_mosaic.version = 11 : i64} {
  func.func @_state_encoding_kernel(%arg0: i32, %arg1: memref<8x64xf32, #tpu.memory_space<vmem>>, %arg2: memref<208x128xf32, #tpu.memory_space<vmem>>, %arg3: memref<8x128xf32, #tpu.memory_space<vmem>>) attributes {dimension_semantics = [#tpu.dimension_semantics<parallel>], iteration_bounds = array<i64: 1>, scalar_prefetch = 0 : i64, scratch_operands = 0 : i64, tpu.core_type = #tpu.core_type<tc>, window_params = [{transform_indices = @transform_0, window_bounds = array<i64: 8, 64>}, {pipeline_mode = #tpu.pipeline_mode<synchronous>, transform_indices = @transform_1, window_bounds = array<i64: 208, 128>}, {transform_indices = @transform_2, window_bounds = array<i64: 8, 128>}]} {
    %c0 = arith.constant 0 : index
    %c0_0 = arith.constant 0 : index
    %0 = vector.load %arg1[%c0, %c0_0] : memref<8x64xf32, #tpu.memory_space<vmem>>, vector<8x64xf32>
    %c0_1 = arith.constant 0 : index
    %c0_2 = arith.constant 0 : index
    %1 = vector.load %arg2[%c0_1, %c0_2] : memref<208x128xf32, #tpu.memory_space<vmem>>, vector<64x128xf32>
    %c64 = arith.constant 64 : index
    %c0_3 = arith.constant 0 : index
    %2 = vector.load %arg2[%c64, %c0_3] : memref<208x128xf32, #tpu.memory_space<vmem>>, vector<1x128xf32>
    %cst = arith.constant dense<0.000000e+00> : vector<8x128xf32>
    %3 = tpu.matmul %0, %1, %cst {dimension_numbers = #tpu.dot_dimension_numbers<[1], [0], [0], [1], [0, 0, 1, 1], [], []>} : vector<8x64xf32>, vector<64x128xf32>, vector<8x128xf32> -> vector<8x128xf32>
    %4 = vector.broadcast %2 : vector<1x128xf32> to vector<8x128xf32>
    %5 = arith.addf %3, %4 : vector<8x128xf32>
    %cst_4 = arith.constant 5.000000e-01 : f32
    %6 = vector.broadcast %cst_4 : f32 to vector<8x128xf32>
    %7 = arith.mulf %6, %5 : vector<8x128xf32>
    %cst_5 = arith.constant 0.707106769 : f32
    %8 = vector.broadcast %cst_5 : f32 to vector<8x128xf32>
    %9 = arith.mulf %5, %8 : vector<8x128xf32>
    %10 = math.erf %9 : vector<8x128xf32>
    %cst_6 = arith.constant 1.000000e+00 : f32
    %11 = vector.broadcast %cst_6 : f32 to vector<8x128xf32>
    %12 = arith.addf %11, %10 : vector<8x128xf32>
    %13 = arith.mulf %7, %12 : vector<8x128xf32>
    %c72 = arith.constant 72 : index
    %c0_7 = arith.constant 0 : index
    %14 = vector.load %arg2[%c72, %c0_7] : memref<208x128xf32, #tpu.memory_space<vmem>>, vector<128x128xf32>
    %c200 = arith.constant 200 : index
    %c0_8 = arith.constant 0 : index
    %15 = vector.load %arg2[%c200, %c0_8] : memref<208x128xf32, #tpu.memory_space<vmem>>, vector<1x128xf32>
    %cst_9 = arith.constant dense<0.000000e+00> : vector<8x128xf32>
    %16 = tpu.matmul %13, %14, %cst_9 {dimension_numbers = #tpu.dot_dimension_numbers<[1], [0], [0], [1], [0, 0, 1, 1], [], []>} : vector<8x128xf32>, vector<128x128xf32>, vector<8x128xf32> -> vector<8x128xf32>
    %17 = vector.broadcast %15 : vector<1x128xf32> to vector<8x128xf32>
    %18 = arith.addf %16, %17 : vector<8x128xf32>
    %cst_10 = arith.constant 5.000000e-01 : f32
    %19 = vector.broadcast %cst_10 : f32 to vector<8x128xf32>
    %20 = arith.mulf %19, %18 : vector<8x128xf32>
    %cst_11 = arith.constant 0.707106769 : f32
    %21 = vector.broadcast %cst_11 : f32 to vector<8x128xf32>
    %22 = arith.mulf %18, %21 : vector<8x128xf32>
    %23 = math.erf %22 : vector<8x128xf32>
    %cst_12 = arith.constant 1.000000e+00 : f32
    %24 = vector.broadcast %cst_12 : f32 to vector<8x128xf32>
    %25 = arith.addf %24, %23 : vector<8x128xf32>
    %26 = arith.mulf %20, %25 : vector<8x128xf32>
    %c0_13 = arith.constant 0 : index
    %c0_14 = arith.constant 0 : index
    %27 = vector.load %arg3[%c0_13, %c0_14] : memref<8x128xf32, #tpu.memory_space<vmem>>, vector<8x128xf32>
    tpu.vector_store %arg3[%c0_13, %c0_14], %26 {strides = array<i32>} : memref<8x128xf32, #tpu.memory_space<vmem>>, vector<8x128xf32>,
    return
  }
  func.func @transform_0(%arg0: i32) -> (i32, i32) {
    %c0_i32 = arith.constant 0 : i32
    %c0_i32_0 = arith.constant 0 : i32
    return %arg0, %c0_i32 : i32, i32
  }
  func.func @transform_1(%arg0: i32) -> (i32, i32) {
    %c0_i32 = arith.constant 0 : i32
    %c0_i32_0 = arith.constant 0 : i32
    %c0_i32_1 = arith.constant 0 : i32
    return %c0_i32, %c0_i32_0 : i32, i32
  }
  func.func @transform_2(%arg0: i32) -> (i32, i32) {
    %c0_i32 = arith.constant 0 : i32
    %c0_i32_0 = arith.constant 0 : i32
    return %arg0, %c0_i32 : i32, i32
  }
}

</mosaic_0001>

<llo_original>
// kernel: tpu_custom_call.1
$region0: #{tpu_custom_call.1}
  #allocation0 [shape = 'u32[]', space=smem, size = 0x4, offset = 0x4, fixed_abs, tag = 'smem constant byte address 0x4 - core index']
  #allocation1 [shape = 'u32[144,128]{1,0:T(1,128)}', space=vmem, size = 0x12000, scoped, tag = 'internal scratch']
  %s0 = inlined_call_operand.hbm [shape: f32[2,64], index: 0, kind: input, shape index: {}]
  %s1 = inlined_call_operand.hbm [shape: f32[208,128], index: 1, kind: input, shape index: {}]
  %s2 = inlined_call_operand.hbm [shape: f32[2,128], index: 2, kind: output, shape index: {}]
  %s3 = sld [smem:[#allocation0]]
  $region26: #{tpu_custom_call.1} parent=0
    _
  %s5 = ssub.s32 1, %s3
  %s6 = scalar_select 0, %s5, %s3
  $region1: #{tpu_custom_call.1} parent=0
    #allocation2 [shape = 'u8[4096]{0}', space=vmem, size = 0x1000, scoped, tag = 'input window, operand 0, single buffered']
    #allocation3 [shape = 's32[1]{0}', space=sflag, size = 0x4, scoped, tag = 'scoped memory for tpu_custom_call.1']
    #allocation4 [shape = 's32[1]{0}', space=sflag, size = 0x4, scoped, tag = 'scoped memory for tpu_custom_call.1']
    #allocation5 [shape = 'u8[106496]{0}', space=vmem, size = 0x1a000, scoped, tag = 'input window, operand 1, single buffered']
    #allocation6 [shape = 's32[1]{0}', space=sflag, size = 0x4, scoped, tag = 'scoped memory for tpu_custom_call.1']
    #allocation7 [shape = 'u8[4096]{0}', space=vmem, size = 0x1000, scoped, tag = 'output window, operand 0, single buffered']
    %7 = vsyncpa [#allocation3], 0
    %8 = vsyncpa [#allocation6], 0
    %9 = vsyncpa [#allocation4], 0
    // Predicated region
    $region2: #{tpu_custom_call.1} parent=1 // pred_check
      _
    $region3: #{tpu_custom_call.1} parent=1 // pred_check_branch
      %11 = sbr.rel (0) target = $region5
    $region4: #{tpu_custom_call.1} parent=1 // pred_region
      %s13 = ssub.s32 128, 32
      %14 = vsyncadd [#allocation3], %s13
      %s15 = sshll.u32 [#allocation2], 4
      %s16 = int_to_ptr.vmem [resolvable:$true] %s15
      %21 = dma.hbm_to_vmem [thread:$0]  %s0, 32, %s16, [#allocation3], 32, 32, 2
    $region5: #{tpu_custom_call.1} parent=1 // pred_fallthru
      _
    // Predicated region
    $region6: #{tpu_custom_call.1} parent=1 // pred_check
      _
    $region7: #{tpu_custom_call.1} parent=1 // pred_check_branch
      %23 = sbr.rel (0) target = $region9
    $region8: #{tpu_custom_call.1} parent=1 // pred_region
      %s25 = ssub.s32 3328, 3328
      %26 = vsyncadd [#allocation6], %s25
      %s27 = sshll.u32 [#allocation5], 4
      %s28 = int_to_ptr.vmem [resolvable:$true] %s27
      %33 = dma.hbm_to_vmem [thread:$0]  %s1, 3328, %s28, [#allocation6], 128, 128, 8
    $region9: #{tpu_custom_call.1} parent=1 // pred_fallthru
      _
    // Predicated region
    $region10: #{tpu_custom_call.1} parent=1 // pred_check
      _
    $region11: #{tpu_custom_call.1} parent=1 // pred_check_branch
      %35 = sbr.rel (0) target = $region13
    $region12: #{tpu_custom_call.1} parent=1 // pred_region
      %36 = dma.done [#allocation3], 128
    $region13: #{tpu_custom_call.1} parent=1 // pred_fallthru
      _
    // Predicated region
    $region14: #{tpu_custom_call.1} parent=1 // pred_check
      _
    $region15: #{tpu_custom_call.1} parent=1 // pred_check_branch
      %38 = sbr.rel (0) target = $region17
    $region16: #{tpu_custom_call.1} parent=1 // pred_region
      %39 = dma.done [#allocation6], 3328
    $region17: #{tpu_custom_call.1} parent=1 // pred_fallthru
      _
    %v40 = vld [vmem:[#allocation2] sm:$0xff]
    %v41 = vld [vmem:[#allocation5] sm:$0xff]
    %v42 = vld [vmem:[#allocation5 + $0x8] sm:$0xff]
    %v43 = vld [vmem:[#allocation5 + $0x10] sm:$0xff]
    %v44 = vld [vmem:[#allocation5 + $0x18] sm:$0xff]
    %v45 = vld [vmem:[#allocation5 + $0x20] sm:$0xff]
    %v46 = vld [vmem:[#allocation5 + $0x28] sm:$0xff]
    %v47 = vld [vmem:[#allocation5 + $0x30] sm:$0xff]
    %v48 = vld [vmem:[#allocation5 + $0x38] sm:$0xff]
    %v49 = vld [vmem:[#allocation5 + $0x40] sm:$0x1]
    %v50 = vlaneseq
    %v51 = vshrl.u32 %v50, 7
    %v52 = vsub.s32 0, %v51
    %v53 = vrot.slane %v49, %v52
    %vm54 = vcmask 523264
    %v56 = vsel %vm54, %v40, 0
    %58 = vmatprep.subr.mxu0 0.0
    %59 = vmatpush1.msra.mxu0 %v41
    %60 = vmatprep.subr.mxu0 0.0
    %61 = vmatpush1.msra.mxu0 %v42
    %62 = vmatprep.subr.mxu0 0.0
    %63 = vmatpush1.msra.mxu0 %v43
    %64 = vmatprep.subr.mxu0 0.0
    %65 = vmatpush1.msra.mxu0 %v44
    %66 = vmatprep.subr.mxu0 0.0
    %67 = vmatpush1.msra.mxu0 %v45
    %68 = vmatprep.subr.mxu0 0.0
    %69 = vmatpush1.msra.mxu0 %v46
    %70 = vmatprep.subr.mxu0 0.0
    %71 = vmatpush1.msra.mxu0 %v47
    %72 = vmatprep.subr.mxu0 0.0
    %73 = vmatpush1.msra.mxu0 %v48
    %74 = vmatprep.subr.mxu0 0.0
    %75 = vmatpush1.msra.mxu0 0.0
    %76 = vmatprep.subr.mxu0 0.0
    %77 = vmatpush1.msra.mxu0 0.0
    %78 = vmatprep.subr.mxu0 0.0
    %79 = vmatpush1.msra.mxu0 0.0
    %80 = vmatprep.subr.mxu0 0.0
    %81 = vmatpush1.msra.mxu0 0.0
    %82 = vmatprep.subr.mxu0 0.0
    %83 = vmatpush1.msra.mxu0 0.0
    %84 = vmatprep.subr.mxu0 0.0
    %85 = vmatpush1.msra.mxu0 0.0
    %86 = vmatprep.subr.mxu0 0.0
    %87 = vmatpush1.msra.mxu0 0.0
    %88 = vmatprep.subr.mxu0 0.0
    %89 = vmatpush1.msra.mxu0 0.0
    %90 = vmatprep.subr.mxu0 0.0
    %91 = vmatpush1.msra.mxu0 0.0
    %92 = vmatprep.subr.mxu0 0.0
    %93 = vmatpush1.msra.mxu0 0.0
    %94 = vmatprep.subr.mxu0 0.0
    %95 = vmatpush1.msra.mxu0 0.0
    %96 = vmatprep.subr.mxu0 0.0
    %97 = vmatpush1.msra.mxu0 0.0
    %98 = vmatprep.subr.mxu0 0.0
    %99 = vmatpush1.msra.mxu0 0.0
    %100 = vmatprep.subr.mxu0 0.0
    %101 = vmatpush1.msra.mxu0 0.0
    %102 = vmatprep.subr.mxu0 0.0
    %103 = vmatpush1.msra.mxu0 0.0
    %104 = vmatprep.subr.mxu0 0.0
    %105 = vmatpush1.msra.mxu0 0.0
    %106 = vmatprep.subr.mxu0 0.0
    %107 = vmatpush1.msra.mxu0 0.0
    %108 = vmatprep.subr.mxu0 0.0
    %109 = vmatpush1.msra.mxu0 0.0
    %110 = vmatprep.subr.mxu0 0.0
    %111 = vmatpush1.msra.mxu0 0.0
    %112 = vmatprep.subr.mxu0 0.0
    %113 = vmatpush1.msra.mxu0 0.0
    %114 = vmatprep.subr.mxu0 0.0
    %115 = vmatpush1.msra.mxu0 0.0
    %116 = vmatprep.subr.mxu0 0.0
    %117 = vmatpush1.msra.mxu0 0.0
    %118 = vmatprep.subr.mxu0 0.0
    %119 = vmatpush1.msra.mxu0 0.0
    %120 = vmatprep.subr.mxu0 0.0
    %121 = vmatpush1.msra.mxu0 0.0
    %122 = vmatprep.mubr.f32.mxu0 0.0
    %123 = vmatmul.mubr.f32.gmra.mrb[0].mxu0 %v56
    %v124 = vpop.f32.mrb[0].mxu0
    %v125 = vadd.f32 %v53, %v124
    %v126 = vpop.f32.mrb[0].mxu0
    %127 = vdwg.mxu0
    %v128 = vmul.f32 %v125, 0.5
    %v129 = vmul.f32 %v125, 0.70710677
    %v130 = verf.f32.pop %v129
    %v131 = vadd.f32 %v130, 1.0
    %v132 = vmul.f32 %v128, %v131
    %v133 = vld [vmem:[#allocation5 + $0x48] sm:$0xff]
    %v134 = vld [vmem:[#allocation5 + $0x50] sm:$0xff]
    %v135 = vld [vmem:[#allocation5 + $0x58] sm:$0xff]
    %v136 = vld [vmem:[#allocation5 + $0x60] sm:$0xff]
    %v137 = vld [vmem:[#allocation5 + $0x68] sm:$0xff]
    %v138 = vld [vmem:[#allocation5 + $0x70] sm:$0xff]
    %v139 = vld [vmem:[#allocation5 + $0x78] sm:$0xff]
    %v140 = vld [vmem:[#allocation5 + $0x80] sm:$0xff]
    %v141 = vld [vmem:[#allocation5 + $0x88] sm:$0xff]
    %v142 = vld [vmem:[#allocation5 + $0x90] sm:$0xff]
    %v143 = vld [vmem:[#allocation5 + $0x98] sm:$0xff]
    %v144 = vld [vmem:[#allocation5 + $0xa0] sm:$0xff]
    %v145 = vld [vmem:[#allocation5 + $0xa8] sm:$0xff]
    %v146 = vld [vmem:[#allocation5 + $0xb0] sm:$0xff]
    %v147 = vld [vmem:[#allocation5 + $0xb8] sm:$0xff]
    %v148 = vld [vmem:[#allocation5 + $0xc0] sm:$0xff]
    %v149 = vld [vmem:[#allocation5 + $0xc8] sm:$0x1]
    %v150 = vlaneseq
    %v151 = vshrl.u32 %v150, 7
    %v152 = vsub.s32 0, %v151
    %v153 = vrot.slane %v149, %v152
    %154 = vmatprep.subr.mxu0 0.0
    %155 = vmatpush1.msra.mxu0 %v133
    %156 = vmatprep.subr.mxu0 0.0
    %157 = vmatpush1.msra.mxu0 %v134
    %158 = vmatprep.subr.mxu0 0.0
    %159 = vmatpush1.msra.mxu0 %v135
    %160 = vmatprep.subr.mxu0 0.0
    %161 = vmatpush1.msra.mxu0 %v136
    %162 = vmatprep.subr.mxu0 0.0
    %163 = vmatpush1.msra.mxu0 %v137
    %164 = vmatprep.subr.mxu0 0.0
    %165 = vmatpush1.msra.mxu0 %v138
    %166 = vmatprep.subr.mxu0 0.0
    %167 = vmatpush1.msra.mxu0 %v139
    %168 = vmatprep.subr.mxu0 0.0
    %169 = vmatpush1.msra.mxu0 %v140
    %170 = vmatprep.subr.mxu0 0.0
    %171 = vmatpush1.msra.mxu0 %v141
    %172 = vmatprep.subr.mxu0 0.0
    %173 = vmatpush1.msra.mxu0 %v142
    %174 = vmatprep.subr.mxu0 0.0
    %175 = vmatpush1.msra.mxu0 %v143
    %176 = vmatprep.subr.mxu0 0.0
    %177 = vmatpush1.msra.mxu0 %v144
    %178 = vmatprep.subr.mxu0 0.0
    %179 = vmatpush1.msra.mxu0 %v145
    %180 = vmatprep.subr.mxu0 0.0
    %181 = vmatpush1.msra.mxu0 %v146
    %182 = vmatprep.subr.mxu0 0.0
    %183 = vmatpush1.msra.mxu0 %v147
    %184 = vmatprep.subr.mxu0 0.0
    %185 = vmatpush1.msra.mxu0 %v148
    %186 = vmatprep.subr.mxu0 0.0
    %187 = vmatpush1.msra.mxu0 0.0
    %188 = vmatprep.subr.mxu0 0.0
    %189 = vmatpush1.msra.mxu0 0.0
    %190 = vmatprep.subr.mxu0 0.0
    %191 = vmatpush1.msra.mxu0 0.0
    %192 = vmatprep.subr.mxu0 0.0
    %193 = vmatpush1.msra.mxu0 0.0
    %194 = vmatprep.subr.mxu0 0.0
    %195 = vmatpush1.msra.mxu0 0.0
    %196 = vmatprep.subr.mxu0 0.0
    %197 = vmatpush1.msra.mxu0 0.0
    %198 = vmatprep.subr.mxu0 0.0
    %199 = vmatpush1.msra.mxu0 0.0
    %200 = vmatprep.subr.mxu0 0.0
    %201 = vmatpush1.msra.mxu0 0.0
    %202 = vmatprep.subr.mxu0 0.0
    %203 = vmatpush1.msra.mxu0 0.0
    %204 = vmatprep.subr.mxu0 0.0
    %205 = vmatpush1.msra.mxu0 0.0
    %206 = vmatprep.subr.mxu0 0.0
    %207 = vmatpush1.msra.mxu0 0.0
    %208 = vmatprep.subr.mxu0 0.0
    %209 = vmatpush1.msra.mxu0 0.0
    %210 = vmatprep.subr.mxu0 0.0
    %211 = vmatpush1.msra.mxu0 0.0
    %212 = vmatprep.subr.mxu0 0.0
    %213 = vmatpush1.msra.mxu0 0.0
    %214 = vmatprep.subr.mxu0 0.0
    %215 = vmatpush1.msra.mxu0 0.0
    %216 = vmatprep.subr.mxu0 0.0
    %217 = vmatpush1.msra.mxu0 0.0
    %218 = vmatprep.mubr.f32.mxu0 0.0
    %219 = vmatmul.mubr.f32.gmra.mrb[0].mxu0 %v132
    %v220 = vpop.f32.mrb[0].mxu0
    %v221 = vadd.f32 %v153, %v220
    %v222 = vpop.f32.mrb[0].mxu0
    %223 = vdwg.mxu0
    %v224 = vmul.f32 %v221, 0.5
    %v225 = vmul.f32 %v221, 0.70710677
    %v226 = verf.f32.pop %v225
    %v227 = vadd.f32 %v226, 1.0
    %v228 = vmul.f32 %v224, %v227
    %229 = vst [vmem:[#allocation7] sm:$0xff] %v228
    // Predicated region
    $region18: #{tpu_custom_call.1} parent=1 // pred_check
      _
    $region19: #{tpu_custom_call.1} parent=1 // pred_check_branch
      %231 = sbr.rel (0) target = $region21
    $region20: #{tpu_custom_call.1} parent=1 // pred_region
      %s233 = ssub.s32 128, 32
      %234 = vsyncadd [#allocation4], %s233
      %s235 = sshll.u32 [#allocation7], 4
      %s236 = int_to_ptr.vmem [resolvable:$true] %s235
      %241 = dma.vmem_to_hbm [thread:$0]  %s236, 32, %s2, [#allocation4], 32, 32, 2
    $region21: #{tpu_custom_call.1} parent=1 // pred_fallthru
      _
    // Predicated region
    $region22: #{tpu_custom_call.1} parent=1 // pred_check
      _
    $region23: #{tpu_custom_call.1} parent=1 // pred_check_branch
      %243 = sbr.rel (0) target = $region25
    $region24: #{tpu_custom_call.1} parent=1 // pred_region
      %244 = dma.done [#allocation4], 128
    $region25: #{tpu_custom_call.1} parent=1 // pred_fallthru
      _
    %245 = vsyncpa [#allocation3], 1
    %246 = vsyncpa [#allocation6], 1
    %247 = vsyncpa [#allocation4], 1

</llo_original>
